<compile_context>
chip_gen: v7x
topology: tpu7x:2x2x1
jax: 0.10.0
libtpu: 0.0.40
codegen_flags: <defaults>
</compile_context>

<pallas_src>
import functools
import math

import jax
import jax.numpy as jnp
from jax.experimental import pallas as pl
from jax.experimental.pallas import tpu as pltpu

CLS_LOSS_WEIGHT = 1.0
LOC_LOSS_WEIGHT = 2.0
FP_TH = 0.5
# sigmoid(x) > th  <=>  x > logit(th); exact, avoids a per-anchor EUP sigmoid.
_LOGIT_TH = float(math.log(FP_TH / (1.0 - FP_TH)))  # == 0.0 for th = 0.5

_LANE = 128
_PART_ROWS = 8  # minimal legal (8,128) f32 tile for the partial-sum output


def _make_kernel(n_valid, block_rows, needs_mask):
    """Build the per-block kernel.

    Block layouts (all lane-dense):
      conf_ref, lab_ref : [block_rows, 128]      (anchor-flat)
      loc_ref, tgt_ref  : [4, block_rows, 128]   (coord-major)
      fp_ref            : [block_rows, 128]
      part_ref          : [1, 8, 128]  lanes 0/1/2 of row 0 hold
                          (bce_sum, loc_sum, num_pos) for this block.
    """
    block_elems = block_rows * _LANE

    def kernel(conf_ref, lab_ref, loc_ref, tgt_ref, fp_ref, part_ref):
        conf = conf_ref[...].astype(jnp.float32)   # [R, 128]
        lab = lab_ref[...].astype(jnp.float32)     # [R, 128]

        # ---- generate_fp_label (no-grad branch): single select -----------
        gt = conf > _LOGIT_TH
        fp_ref[...] = jnp.where(gt, lab, -1.0).astype(fp_ref.dtype)

        # ---- validity mask for the padded tail block ----------------------
        if needs_mask:
            i = pl.program_id(0)
            row = jax.lax.broadcasted_iota(jnp.int32, (block_rows, _LANE), 0)
            col = jax.lax.broadcasted_iota(jnp.int32, (block_rows, _LANE), 1)
            flat = i * block_elems + row * _LANE + col
            valid = (flat < n_valid).astype(jnp.float32)
        else:
            valid = None

        # ---- cls_loss_fn partial: BCE-with-logits sum ---------------------
        bce = (jnp.maximum(conf, 0.0) - conf * lab
               + jnp.log1p(jnp.exp(-jnp.abs(conf))))
        if valid is not None:
            bce = bce * valid
        bce_sum = jnp.sum(bce)

        # ---- loc_loss_fn partial: smooth-L1 on positive anchors -----------
        pos = (lab > 0.0).astype(jnp.float32)
        if valid is not None:
            pos = pos * valid
        num_pos = jnp.sum(pos)

        diff = loc_ref[...].astype(jnp.float32) - tgt_ref[...].astype(jnp.float32)
        ad = jnp.abs(diff)
        sl1 = jnp.where(ad < 1.0, 0.5 * diff * diff, ad - 0.5)
        loc_sum = jnp.sum(sl1 * pos[None, :, :])   # broadcast over coord axis

        # ---- emit per-block partials (lane-padded) -------------------------
        colp = jax.lax.broadcasted_iota(jnp.int32, (_PART_ROWS, _LANE), 1)
        vals = jnp.where(colp == 0, bce_sum,
               jnp.where(colp == 1, loc_sum,
               jnp.where(colp == 2, num_pos, 0.0)))
        part_ref[0] = vals

    return kernel


@functools.partial(jax.jit, static_argnames=("block_anchors",))
def criterion_forward(conf, loc, bbox_targets, block_anchors=1024):
    """conf: [B, A, 1], loc: [B, A, 4], bbox_targets: [B, A, 5] (4 coords + label).

    Returns (weighted_cls_loss, weighted_loc_loss, total_loss, fp_label[B,A,1]).
    For realistic MogFace anchor counts raise block_anchors to 2048-4096.
    """
    assert block_anchors % (8 * _LANE) == 0
    B, A, _ = conf.shape
    N = B * A
    n_blocks = -(-N // block_anchors)          # cdiv
    n_pad_total = n_blocks * block_anchors
    pad = n_pad_total - N

    # Layout plumbing (lane-dense presentation; flat anchor order = b*A + a):
    conf_f = conf.reshape(N)                                         # free
    lab_f = bbox_targets[..., 4].reshape(N)
    loc_t = jnp.transpose(loc, (2, 0, 1)).reshape(4, N)              # coord-major
    tgt_t = jnp.transpose(bbox_targets[..., :4], (2, 0, 1)).reshape(4, N)
    if pad:
        conf_f = jnp.pad(conf_f, (0, pad))
        lab_f = jnp.pad(lab_f, (0, pad))
        loc_t = jnp.pad(loc_t, ((0, 0), (0, pad)))
        tgt_t = jnp.pad(tgt_t, ((0, 0), (0, pad)))

    rows = n_pad_total // _LANE
    block_rows = block_anchors // _LANE        # >= 8, multiple of 8
    conf2 = conf_f.reshape(rows, _LANE)
    lab2 = lab_f.reshape(rows, _LANE)
    loc3 = loc_t.reshape(4, rows, _LANE)
    tgt3 = tgt_t.reshape(4, rows, _LANE)

    kernel = _make_kernel(N, block_rows, pad > 0)

    fp2, partials = pl.pallas_call(
        kernel,
        out_shape=(
            jax.ShapeDtypeStruct((rows, _LANE), jnp.float32),            # fp_label
            jax.ShapeDtypeStruct((n_blocks, _PART_ROWS, _LANE), jnp.float32),
        ),
        grid=(n_blocks,),
        in_specs=[
            pl.BlockSpec((block_rows, _LANE), lambda i: (i, 0)),         # conf
            pl.BlockSpec((block_rows, _LANE), lambda i: (i, 0)),         # labels
            pl.BlockSpec((4, block_rows, _LANE), lambda i: (0, i, 0)),   # loc
            pl.BlockSpec((4, block_rows, _LANE), lambda i: (0, i, 0)),   # box tgt
        ],
        out_specs=(
            pl.BlockSpec((block_rows, _LANE), lambda i: (i, 0)),
            pl.BlockSpec((1, _PART_ROWS, _LANE), lambda i: (i, 0, 0)),
        ),
        compiler_params=pltpu.CompilerParams(
            dimension_semantics=("parallel",)),
    )(conf2, lab2, loc3, tgt3)

    # Tiny final reduction over per-block partials (wrapper side).
    bce_total = jnp.sum(partials[:, 0, 0])
    loc_total = jnp.sum(partials[:, 0, 1])
    num_pos = jnp.sum(partials[:, 0, 2])
    cls_loss = bce_total / N                       # true element count
    loc_loss = loc_total / jnp.maximum(num_pos, 1.0)

    wc = CLS_LOSS_WEIGHT * cls_loss
    wl = LOC_LOSS_WEIGHT * loc_loss
    fp_label = fp2.reshape(n_pad_total)[:N].reshape(B, A, 1)
    return wc, wl, wc + wl, fp_label


def _reference_forward(conf, loc, bbox_targets):
    """Pure-JAX reference with the original (sigmoid-based) formulation."""
    labels = bbox_targets[:, :, -1:].astype(jnp.float32)
    c = conf.astype(jnp.float32)
    bce = jnp.maximum(c, 0.0) - c * labels + jnp.log1p(jnp.exp(-jnp.abs(c)))
    cls_loss = jnp.mean(bce)
    pos = (labels[..., 0] > 0.0).astype(jnp.float32)
    diff = loc.astype(jnp.float32) - bbox_targets[..., :4].astype(jnp.float32)
    ad = jnp.abs(diff)
    sl1 = jnp.where(ad < 1.0, 0.5 * diff * diff, ad - 0.5)
    loc_loss = jnp.sum(sl1 * pos[..., None]) / jnp.maximum(jnp.sum(pos), 1.0)
    wc = CLS_LOSS_WEIGHT * cls_loss
    wl = LOC_LOSS_WEIGHT * loc_loss
    sig = jax.nn.sigmoid(c)
    gt = (sig > FP_TH).astype(jnp.float32)
    mask_tp = gt * labels
    mask_fp = gt * (1.0 - labels)
    mask_tp = jnp.where(mask_tp == 0.0, -1.0, mask_tp)
    mask_tp = jnp.where(mask_fp == 1.0, 0.0, mask_tp)
    return wc, wl, wc + wl, mask_tp


if __name__ == "__main__":
    # B*A = 2000 anchors -> two 1024-anchor grid blocks, with a masked tail.
    B, A = 2, 1000
    key = jax.random.PRNGKey(0)
    k1, k2, k3, k4 = jax.random.split(key, 4)

    conf = jax.random.normal(k1, (B, A, 1), dtype=jnp.float32)
    loc = jax.random.normal(k2, (B, A, 4), dtype=jnp.float32)
    box_coords = jax.random.normal(k3, (B, A, 4), dtype=jnp.float32)
    labels = (jax.random.uniform(k4, (B, A, 1)) > 0.7).astype(jnp.float32)
    bbox_targets = jnp.concatenate([box_coords, labels], axis=-1)  # [B, A, 5]

    outs = criterion_forward(conf, loc, bbox_targets)
    jax.block_until_ready(outs)
    cls_l, loc_l, tot_l, fp_label = outs

    r_cls, r_loc, r_tot, r_fp = _reference_forward(conf, loc, bbox_targets)
    assert jnp.allclose(cls_l, r_cls, rtol=1e-5, atol=1e-5), (cls_l, r_cls)
    assert jnp.allclose(loc_l, r_loc, rtol=1e-5, atol=1e-5), (loc_l, r_loc)
    assert jnp.allclose(tot_l, r_tot, rtol=1e-5, atol=1e-5), (tot_l, r_tot)
    assert jnp.allclose(fp_label, r_fp), "fp_label mismatch"

    print("KERNEL_OK")
</pallas_src>

<mosaic_0001>
module attributes {stable_mosaic.version = 11 : i64} {
  func.func @kernel(%arg0: i32, %arg1: memref<8x128xf32, #tpu.memory_space<vmem>>, %arg2: memref<8x128xf32, #tpu.memory_space<vmem>>, %arg3: memref<4x8x128xf32, #tpu.memory_space<vmem>>, %arg4: memref<4x8x128xf32, #tpu.memory_space<vmem>>, %arg5: memref<8x128xf32, #tpu.memory_space<vmem>>, %arg6: memref<1x8x128xf32, #tpu.memory_space<vmem>>) attributes {dimension_semantics = [#tpu.dimension_semantics<parallel>], iteration_bounds = array<i64: 2>, scalar_prefetch = 0 : i64, scratch_operands = 0 : i64, tpu.core_type = #tpu.core_type<tc>, window_params = [{transform_indices = @transform_0, window_bounds = array<i64: 8, 128>}, {transform_indices = @transform_1, window_bounds = array<i64: 8, 128>}, {transform_indices = @transform_2, window_bounds = array<i64: 4, 8, 128>}, {transform_indices = @transform_3, window_bounds = array<i64: 4, 8, 128>}, {transform_indices = @transform_4, window_bounds = array<i64: 8, 128>}, {transform_indices = @transform_5, window_bounds = array<i64: 1, 8, 128>}]} {
    %c0 = arith.constant 0 : index
    %c0_0 = arith.constant 0 : index
    %0 = vector.load %arg1[%c0, %c0_0] : memref<8x128xf32, #tpu.memory_space<vmem>>, vector<8x128xf32>
    %c0_1 = arith.constant 0 : index
    %c0_2 = arith.constant 0 : index
    %1 = vector.load %arg2[%c0_1, %c0_2] : memref<8x128xf32, #tpu.memory_space<vmem>>, vector<8x128xf32>
    %cst = arith.constant 0.000000e+00 : f32
    %2 = vector.broadcast %cst : f32 to vector<8x128xf32>
    %3 = arith.cmpf ogt, %0, %2 : vector<8x128xf32>
    %cst_3 = arith.constant -1.000000e+00 : f32
    %4 = vector.broadcast %cst_3 : f32 to vector<8x128xf32>
    %5 = arith.select %3, %1, %4 : vector<8x128xi1>, vector<8x128xf32>
    %c0_4 = arith.constant 0 : index
    %c0_5 = arith.constant 0 : index
    %6 = vector.load %arg5[%c0_4, %c0_5] : memref<8x128xf32, #tpu.memory_space<vmem>>, vector<8x128xf32>
    tpu.vector_store %arg5[%c0_4, %c0_5], %5 {strides = array<i32>} : memref<8x128xf32, #tpu.memory_space<vmem>>, vector<8x128xf32>,
    %7 = tpu.iota {dimensions = array<i32: 0>} : vector<8x128xi32>
    %8 = tpu.iota {dimensions = array<i32: 1>} : vector<8x128xi32>
    %c1024_i32 = arith.constant 1024 : i32
    %9 = arith.muli %arg0, %c1024_i32 : i32
    %c128_i32 = arith.constant 128 : i32
    %10 = vector.broadcast %c128_i32 : i32 to vector<8x128xi32>
    %11 = arith.muli %7, %10 : vector<8x128xi32>
    %12 = vector.broadcast %9 : i32 to vector<8x128xi32>
    %13 = arith.addi %12, %11 : vector<8x128xi32>
    %14 = arith.addi %13, %8 : vector<8x128xi32>
    %c2000_i32 = arith.constant 2000 : i32
    %15 = vector.broadcast %c2000_i32 : i32 to vector<8x128xi32>
    %16 = arith.cmpi slt, %14, %15 : vector<8x128xi32>
    %17 = arith.extui %16 : vector<8x128xi1> to vector<8x128xi32>
    %18 = arith.sitofp %17 : vector<8x128xi32> to vector<8x128xf32>
    %cst_6 = arith.constant 0.000000e+00 : f32
    %19 = vector.broadcast %cst_6 : f32 to vector<8x128xf32>
    %20 = arith.maximumf %0, %19 : vector<8x128xf32>
    %21 = arith.mulf %0, %1 : vector<8x128xf32>
    %22 = arith.subf %20, %21 : vector<8x128xf32>
    %23 = math.absf %0 : vector<8x128xf32>
    %cst_7 = arith.constant 0.000000e+00 : f32
    %24 = vector.broadcast %cst_7 : f32 to vector<8x128xf32>
    %25 = arith.subf %24, %23 : vector<8x128xf32>
    %26 = math.exp %25 : vector<8x128xf32>
    %27 = math.log1p %26 : vector<8x128xf32>
    %28 = arith.addf %22, %27 : vector<8x128xf32>
    %29 = arith.mulf %28, %18 : vector<8x128xf32>
    %30 = vector.shape_cast %29 : vector<8x128xf32> to vector<1x8x128xf32>
    %cst_8 = arith.constant dense<0.000000e+00> : vector<1xf32>
    %31 = vector.multi_reduction <add>, %30, %cst_8 [1, 2] : vector<1x8x128xf32> to vector<1xf32>
    %32 = vector.shape_cast %31 : vector<1xf32> to vector<1x1x1xf32>
    %33 = vector.extract %32[0, 0, 0] : f32 from vector<1x1x1xf32>
    %cst_9 = arith.constant 0.000000e+00 : f32
    %34 = vector.broadcast %cst_9 : f32 to vector<8x128xf32>
    %35 = arith.cmpf ogt, %1, %34 : vector<8x128xf32>
    %36 = arith.extui %35 : vector<8x128xi1> to vector<8x128xi32>
    %37 = arith.sitofp %36 : vector<8x128xi32> to vector<8x128xf32>
    %38 = arith.mulf %37, %18 : vector<8x128xf32>
    %39 = vector.shape_cast %38 : vector<8x128xf32> to vector<1x8x128xf32>
    %cst_10 = arith.constant dense<0.000000e+00> : vector<1xf32>
    %40 = vector.multi_reduction <add>, %39, %cst_10 [1, 2] : vector<1x8x128xf32> to vector<1xf32>
    %41 = vector.shape_cast %40 : vector<1xf32> to vector<1x1x1xf32>
    %42 = vector.extract %41[0, 0, 0] : f32 from vector<1x1x1xf32>
    %c0_11 = arith.constant 0 : index
    %c0_12 = arith.constant 0 : index
    %c0_13 = arith.constant 0 : index
    %43 = vector.load %arg3[%c0_11, %c0_12, %c0_13] : memref<4x8x128xf32, #tpu.memory_space<vmem>>, vector<4x8x128xf32>
    %c0_14 = arith.constant 0 : index
    %c0_15 = arith.constant 0 : index
    %c0_16 = arith.constant 0 : index
    %44 = vector.load %arg4[%c0_14, %c0_15, %c0_16] : memref<4x8x128xf32, #tpu.memory_space<vmem>>, vector<4x8x128xf32>
    %45 = arith.subf %43, %44 : vector<4x8x128xf32>
    %46 = math.absf %45 : vector<4x8x128xf32>
    %cst_17 = arith.constant 1.000000e+00 : f32
    %47 = vector.broadcast %cst_17 : f32 to vector<4x8x128xf32>
    %48 = arith.cmpf olt, %46, %47 : vector<4x8x128xf32>
    %cst_18 = arith.constant 5.000000e-01 : f32
    %49 = vector.broadcast %cst_18 : f32 to vector<4x8x128xf32>
    %50 = arith.mulf %49, %45 : vector<4x8x128xf32>
    %51 = arith.mulf %50, %45 : vector<4x8x128xf32>
    %cst_19 = arith.constant 5.000000e-01 : f32
    %52 = vector.broadcast %cst_19 : f32 to vector<4x8x128xf32>
    %53 = arith.subf %46, %52 : vector<4x8x128xf32>
    %54 = arith.select %48, %51, %53 : vector<4x8x128xi1>, vector<4x8x128xf32>
    %55 = vector.shape_cast %38 : vector<8x128xf32> to vector<1x8x128xf32>
    %56 = vector.broadcast %55 : vector<1x8x128xf32> to vector<4x8x128xf32>
    %57 = arith.mulf %54, %56 : vector<4x8x128xf32>
    %58 = vector.shape_cast %57 : vector<4x8x128xf32> to vector<1x4x8x128xf32>
    %cst_20 = arith.constant dense<0.000000e+00> : vector<1xf32>
    %59 = vector.multi_reduction <add>, %58, %cst_20 [1, 2, 3] : vector<1x4x8x128xf32> to vector<1xf32>
    %60 = vector.shape_cast %59 : vector<1xf32> to vector<1x1x1x1xf32>
    %61 = vector.extract %60[0, 0, 0, 0] : f32 from vector<1x1x1x1xf32>
    %62 = tpu.iota {dimensions = array<i32: 1>} : vector<8x128xi32>
    %c0_i32 = arith.constant 0 : i32
    %63 = vector.broadcast %c0_i32 : i32 to vector<8x128xi32>
    %64 = arith.cmpi eq, %62, %63 : vector<8x128xi32>
    %c1_i32 = arith.constant 1 : i32
    %65 = vector.broadcast %c1_i32 : i32 to vector<8x128xi32>
    %66 = arith.cmpi eq, %62, %65 : vector<8x128xi32>
    %c2_i32 = arith.constant 2 : i32
    %67 = vector.broadcast %c2_i32 : i32 to vector<8x128xi32>
    %68 = arith.cmpi eq, %62, %67 : vector<8x128xi32>
    %cst_21 = arith.constant 0.000000e+00 : f32
    %69 = vector.broadcast %42 : f32 to vector<8x128xf32>
    %70 = vector.broadcast %cst_21 : f32 to vector<8x128xf32>
    %71 = arith.select %68, %69, %70 : vector<8x128xi1>, vector<8x128xf32>
    %72 = vector.broadcast %61 : f32 to vector<8x128xf32>
    %73 = arith.select %66, %72, %71 : vector<8x128xi1>, vector<8x128xf32>
    %74 = vector.broadcast %33 : f32 to vector<8x128xf32>
    %75 = arith.select %64, %74, %73 : vector<8x128xi1>, vector<8x128xf32>
    %c0_22 = arith.constant 0 : index
    %c0_23 = arith.constant 0 : index
    %c0_24 = arith.constant 0 : index
    %76 = vector.load %arg6[%c0_22, %c0_23, %c0_24] : memref<1x8x128xf32, #tpu.memory_space<vmem>>, vector<1x8x128xf32>
    %77 = vector.shape_cast %76 : vector<1x8x128xf32> to vector<8x128xf32>
    %78 = vector.shape_cast %75 : vector<8x128xf32> to vector<1x8x128xf32>
    tpu.vector_store %arg6[%c0_22, %c0_23, %c0_24], %78 {strides = array<i32>} : memref<1x8x128xf32, #tpu.memory_space<vmem>>, vector<1x8x128xf32>,
    return
  }
  func.func @transform_0(%arg0: i32) -> (i32, i32) {
    %c0_i32 = arith.constant 0 : i32
    %c0_i32_0 = arith.constant 0 : i32
    return %arg0, %c0_i32 : i32, i32
  }
  func.func @transform_1(%arg0: i32) -> (i32, i32) {
    %c0_i32 = arith.constant 0 : i32
    %c0_i32_0 = arith.constant 0 : i32
    return %arg0, %c0_i32 : i32, i32
  }
  func.func @transform_2(%arg0: i32) -> (i32, i32, i32) {
    %c0_i32 = arith.constant 0 : i32
    %c0_i32_0 = arith.constant 0 : i32
    %c0_i32_1 = arith.constant 0 : i32
    return %c0_i32, %arg0, %c0_i32_0 : i32, i32, i32
  }
  func.func @transform_3(%arg0: i32) -> (i32, i32, i32) {
    %c0_i32 = arith.constant 0 : i32
    %c0_i32_0 = arith.constant 0 : i32
    %c0_i32_1 = arith.constant 0 : i32
    return %c0_i32, %arg0, %c0_i32_0 : i32, i32, i32
  }
  func.func @transform_4(%arg0: i32) -> (i32, i32) {
    %c0_i32 = arith.constant 0 : i32
    %c0_i32_0 = arith.constant 0 : i32
    return %arg0, %c0_i32 : i32, i32
  }
  func.func @transform_5(%arg0: i32) -> (i32, i32, i32) {
    %c0_i32 = arith.constant 0 : i32
    %c0_i32_0 = arith.constant 0 : i32
    %c0_i32_1 = arith.constant 0 : i32
    return %arg0, %c0_i32, %c0_i32_0 : i32, i32, i32
  }
}

</mosaic_0001>

<llo_original>
// kernel: squeeze.4
$region0: #{squeeze.4}
  %s0 = inlined_call_operand.vmem [shape: f32[2,1000,1], index: 0, kind: input, shape index: {}]
  %s1 = inlined_call_operand.vmem [shape: f32[2000], index: 1, kind: output, shape index: {}]
  $region1: #{squeeze.4} parent=0
    #allocation0 [shape = 'u8[32768]{0}', space=vmem, size = 0x8000, scoped, tag = 'scoped mem for input reshape']
    %s3 = sshllo.u32 0, 2
    %s4 = smul.addr 2, 7
    %s5 = scalar_lea.vmem %s0, %s4
    %v6 = vld [vmem:[%s5] sm:%s3]
    %s7 = scalar_lea.vmem [#allocation0], 56
    %8 = vst [vmem:[%s7] sm:%s3] %v6
    %s9 = smul.addr 2, 6
    %s10 = scalar_lea.vmem %s0, %s9
    %v11 = vld [vmem:[%s10] sm:%s3]
    %s12 = scalar_lea.vmem [#allocation0], 48
    %13 = vst [vmem:[%s12] sm:%s3] %v11
    %s14 = smul.addr 2, 5
    %s15 = scalar_lea.vmem %s0, %s14
    %v16 = vld [vmem:[%s15] sm:%s3]
    %s17 = scalar_lea.vmem [#allocation0], 40
    %18 = vst [vmem:[%s17] sm:%s3] %v16
    %s19 = smul.addr 2, 4
    %s20 = scalar_lea.vmem %s0, %s19
    %v21 = vld [vmem:[%s20] sm:%s3]
    %s22 = scalar_lea.vmem [#allocation0], 32
    %23 = vst [vmem:[%s22] sm:%s3] %v21
    %s24 = smul.addr 2, 3
    %s25 = scalar_lea.vmem %s0, %s24
    %v26 = vld [vmem:[%s25] sm:%s3]
    %s27 = scalar_lea.vmem [#allocation0], 24
    %28 = vst [vmem:[%s27] sm:%s3] %v26
    %s29 = smul.addr 2, 2
    %s30 = scalar_lea.vmem %s0, %s29
    %v31 = vld [vmem:[%s30] sm:%s3]
    %s32 = scalar_lea.vmem [#allocation0], 16
    %33 = vst [vmem:[%s32] sm:%s3] %v31
    %s34 = scalar_lea.vmem %s0, 2
    %v35 = vld [vmem:[%s34] sm:%s3]
    %s36 = scalar_lea.vmem [#allocation0], 8
    %37 = vst [vmem:[%s36] sm:%s3] %v35
    %v38 = vld [vmem:[%s0] sm:%s3]
    %39 = vst [vmem:[#allocation0] sm:%s3] %v38
    %s40 = scalar_lea.vmem [#allocation0], 56
    %v41 = vld [vmem:[%s40] sm:$0x1]
    %vm42 = vcmask 850944
    %s43 = scalar_lea.vmem %s1, 7
    %44 = vst.msk [vmem:[%s43] sm:$0x1] %vm42, %v41
    %v45 = vld [vmem:[#allocation0] ss:$8 sm:$0xf]
    %v46 = vld [vmem:[#allocation0] ss:$8 sm:$0x70]
    %vm47 = vcmask 1046532
    %v48 = vsel %vm47, %v46, %v45
    %49 = vst [vmem:[%s1] sm:$0x7f] %v48
    %s50 = scalar_lea.vmem [#allocation0], 57
    %v51 = vld [vmem:[%s50] sm:$0x1]
    %s52 = scalar_lea.vmem [#allocation0], 1
    %v53 = vld [vmem:[%s52] ss:$8 sm:$0xf]
    %s54 = scalar_lea.vmem [#allocation0], 1
    %v55 = vld [vmem:[%s54] ss:$8 sm:$0xf0]
    %vm56 = vcmask 1047556
    %v57 = vsel %vm56, %v55, %v53
    %vm58 = vcmask 195584
    %v59 = vsel %vm58, %v57, %v51
    %60 = vrot.lane.b32.xlu0 %v59, 104
    %v61 = vpop.permute.xlu0 %60
    %vm62 = vcmask 654336
    %s63 = scalar_lea.vmem %s1, 15
    %64 = vst.msk [vmem:[%s63] sm:$0x1] %vm62, %v61
    %vm65 = vcmask 1048384
    %s66 = scalar_lea.vmem %s1, 7
    %67 = vst.msk [vmem:[%s66] sm:$0xff] %vm65, %v61
    %s68 = scalar_lea.vmem [#allocation0], 1
    %v69 = vld [vmem:[%s68] ss:$8 sm:$0xf]
    %s70 = scalar_lea.vmem [#allocation0], 1
    %v71 = vld [vmem:[%s70] ss:$8 sm:$0x70]
    %vm72 = vcmask 1046532
    %v73 = vsel %vm72, %v71, %v69
    %74 = vrot.lane.b32.xlu0 %v73, 104
    %v75 = vpop.permute.xlu0 %74
    %vm76 = vcmask 850944
    %s77 = scalar_lea.vmem %s1, 8
    %78 = vst.msk [vmem:[%s77] sm:$0x7f] %vm76, %v75

// kernel: criterion_forward.1
$region0: #{criterion_forward.1}
  #allocation0 [shape = 'u32[]', space=smem, size = 0x4, offset = 0x4, fixed_abs, tag = 'smem constant byte address 0x4 - core index']
  #allocation1 [shape = 'u32[144,128]{1,0:T(1,128)}', space=vmem, size = 0x12000, scoped, tag = 'internal scratch']
  %s0 = inlined_call_operand.vmem [shape: f32[16,128], index: 0, kind: input, shape index: {}]
  %s1 = inlined_call_operand.vmem [shape: f32[16,128], index: 1, kind: input, shape index: {}]
  %s2 = inlined_call_operand.vmem [shape: f32[4,16,128], index: 2, kind: input, shape index: {}]
  %s3 = inlined_call_operand.vmem [shape: f32[4,16,128], index: 3, kind: input, shape index: {}]
  %s4 = inlined_call_operand.vmem [shape: f32[16,128], index: 4, kind: output, shape index: {0}]
  %s5 = inlined_call_operand.vmem [shape: f32[2,8,128], index: 5, kind: output, shape index: {1}]
  %6 = xla_tuple %s4, %s5
  %s7 = sld [smem:[#allocation0]]
  $region133: #{criterion_forward.1} parent=0
    _
  %s9 = ssub.s32 1, %s7
  %s10 = scalar_select 0, %s9, %s7
  $region1: #{criterion_forward.1} parent=0
    #allocation2 [shape = 'u8[32768]{0}', space=vmem, size = 0x8000, scoped, tag = 'input window, operand 2']
    #allocation3 [shape = 'u8[32768]{0}', space=vmem, size = 0x8000, scoped, tag = 'input window, operand 3']
    loop: start=0, step=1, limit=4
    $region2: #{criterion_forward.1} parent=1 // loop_pre_header
      _
    $region3: #{criterion_forward.1} parent=1 // loop_header
      %s12 = sphi 0, %s16
      %p13 = scmp.ge.s32.totalorder %s12, 4
      %s22 = sphi 0, %s24
      %s25 = sphi 0, %s22
      %s26 = sphi 0, %s25
      %s42 = sphi 0, %s26
      %s48 = sphi 0, %s50
      %s51 = sphi 0, %s48
      %s52 = sphi 0, %s51
      %s68 = sphi 0, %s52
      %s74 = sphi 0, %s76
      %s77 = sphi 0, %s74
      %s78 = sphi 0, %s77
      %s94 = sphi 0, %s78
      %s100 = sphi 0, %s102
      %s103 = sphi 0, %s100
      %s104 = sphi 0, %s103
      %s120 = sphi 0, %s104
      %s126 = sphi 0, %s128
      %s129 = sphi 0, %s126
      %s130 = sphi 0, %s129
      %s146 = sphi 0, %s130
      %s152 = sphi 0, %s154
      %s155 = sphi 0, %s152
      %s156 = sphi 0, %s155
      %s172 = sphi 0, %s156
    $region4: #{criterion_forward.1} parent=1 // loop_header_branch
      %15 = sbr.rel (%p13) target = $region8
    $region5: #{criterion_forward.1} parent=1 // loop_body
      %s17 = ssub.s32 %s12, 1
      %s18 = ssub.s32 %s12, 2
      %s19 = sadd.s32 %s12, 1
      %s20 = ssub.s32 %s12, %s19
      %p21 = scmp.eq.s32.totalorder %s20, 0
      %s23 = sadd.s32 %s22, 1
      %s24 = scalar_select %p21, %s22, %s23
      %p27 = pneg %p21
      %p28 = scmp.eq.s32.totalorder %s12, 1
      %p29 = por %p27, %p28
      %p30 = scmp.ne.s32.totalorder %s22, %s25
      %p31 = scmp.eq.s32.totalorder %s12, 0
      %p32 = por %p30, %p31
      %p33 = scmp.ne.s32.totalorder %s22, %s25
      %p34 = scmp.eq.s32.totalorder %s17, 1
      %p35 = por %p33, %p34
      %p36 = scmp.ne.s32.totalorder %s25, %s26
      %p37 = scmp.eq.s32.totalorder %s17, 0
      %p38 = por %p36, %p37
      %p39 = scmp.ne.s32.totalorder %s25, %s26
      %p40 = scmp.eq.s32.totalorder %s18, 1
      %p41 = por %p39, %p40
      %p43 = scmp.ne.s32.totalorder %s26, %s42
      %p44 = scmp.eq.s32.totalorder %s18, 0
      %p45 = por %p43, %p44
      %s46 = ssub.s32 %s12, %s19
      %p47 = scmp.eq.s32.totalorder %s46, 0
      %s49 = sadd.s32 %s48, 1
      %s50 = scalar_select %p47, %s48, %s49
      %p53 = pneg %p47
      %p54 = scmp.eq.s32.totalorder %s12, 1
      %p55 = por %p53, %p54
      %p56 = scmp.ne.s32.totalorder %s48, %s51
      %p57 = scmp.eq.s32.totalorder %s12, 0
      %p58 = por %p56, %p57
      %p59 = scmp.ne.s32.totalorder %s48, %s51
      %p60 = scmp.eq.s32.totalorder %s17, 1
      %p61 = por %p59, %p60
      %p62 = scmp.ne.s32.totalorder %s51, %s52
      %p63 = scmp.eq.s32.totalorder %s17, 0
      %p64 = por %p62, %p63
      %p65 = scmp.ne.s32.totalorder %s51, %s52
      %p66 = scmp.eq.s32.totalorder %s18, 1
      %p67 = por %p65, %p66
      %p69 = scmp.ne.s32.totalorder %s52, %s68
      %p70 = scmp.eq.s32.totalorder %s18, 0
      %p71 = por %p69, %p70
      %s72 = ssub.s32 %s12, %s19
      %p73 = scmp.eq.s32.totalorder %s72, 0
      %s75 = sadd.s32 %s74, 1
      %s76 = scalar_select %p73, %s74, %s75
      %p79 = pneg %p73
      %p80 = scmp.eq.s32.totalorder %s12, 1
      %p81 = por %p79, %p80
      %p82 = scmp.ne.s32.totalorder %s74, %s77
      %p83 = scmp.eq.s32.totalorder %s12, 0
      %p84 = por %p82, %p83
      %p85 = scmp.ne.s32.totalorder %s74, %s77
      %p86 = scmp.eq.s32.totalorder %s17, 1
      %p87 = por %p85, %p86
      %p88 = scmp.ne.s32.totalorder %s77, %s78
      %p89 = scmp.eq.s32.totalorder %s17, 0
      %p90 = por %p88, %p89
      %p91 = scmp.ne.s32.totalorder %s77, %s78
      %p92 = scmp.eq.s32.totalorder %s18, 1
      %p93 = por %p91, %p92
      %p95 = scmp.ne.s32.totalorder %s78, %s94
      %p96 = scmp.eq.s32.totalorder %s18, 0
      %p97 = por %p95, %p96
      %s98 = ssub.s32 %s12, %s19
      %p99 = scmp.eq.s32.totalorder %s98, 0
      %s101 = sadd.s32 %s100, 1
      %s102 = scalar_select %p99, %s100, %s101
      %p105 = pneg %p99
      %p106 = scmp.eq.s32.totalorder %s12, 1
      %p107 = por %p105, %p106
      %p108 = scmp.ne.s32.totalorder %s100, %s103
      %p109 = scmp.eq.s32.totalorder %s12, 0
      %p110 = por %p108, %p109
      %p111 = scmp.ne.s32.totalorder %s100, %s103
      %p112 = scmp.eq.s32.totalorder %s17, 1
      %p113 = por %p111, %p112
      %p114 = scmp.ne.s32.totalorder %s103, %s104
      %p115 = scmp.eq.s32.totalorder %s17, 0
      %p116 = por %p114, %p115
      %p117 = scmp.ne.s32.totalorder %s103, %s104
      %p118 = scmp.eq.s32.totalorder %s18, 1
      %p119 = por %p117, %p118
      %p121 = scmp.ne.s32.totalorder %s104, %s120
      %p122 = scmp.eq.s32.totalorder %s18, 0
      %p123 = por %p121, %p122
      %s124 = ssub.s32 %s12, %s19
      %p125 = scmp.eq.s32.totalorder %s124, 0
      %s127 = sadd.s32 %s126, 1
      %s128 = scalar_select %p125, %s126, %s127
      %p131 = pneg %p125
      %p132 = scmp.eq.s32.totalorder %s12, 1
      %p133 = por %p131, %p132
      %p134 = scmp.ne.s32.totalorder %s126, %s129
      %p135 = scmp.eq.s32.totalorder %s12, 0
      %p136 = por %p134, %p135
      %p137 = scmp.ne.s32.totalorder %s126, %s129
      %p138 = scmp.eq.s32.totalorder %s17, 1
      %p139 = por %p137, %p138
      %p140 = scmp.ne.s32.totalorder %s129, %s130
      %p141 = scmp.eq.s32.totalorder %s17, 0
      %p142 = por %p140, %p141
      %p143 = scmp.ne.s32.totalorder %s129, %s130
      %p144 = scmp.eq.s32.totalorder %s18, 1
      %p145 = por %p143, %p144
      %p147 = scmp.ne.s32.totalorder %s130, %s146
      %p148 = scmp.eq.s32.totalorder %s18, 0
      %p149 = por %p147, %p148
      %s150 = ssub.s32 %s12, %s19
      %p151 = scmp.eq.s32.totalorder %s150, 0
      %s153 = sadd.s32 %s152, 1
      %s154 = scalar_select %p151, %s152, %s153
      %p157 = pneg %p151
      %p158 = scmp.eq.s32.totalorder %s12, 1
      %p159 = por %p157, %p158
      %p160 = scmp.ne.s32.totalorder %s152, %s155
      %p161 = scmp.eq.s32.totalorder %s12, 0
      %p162 = por %p160, %p161
      %p163 = scmp.ne.s32.totalorder %s152, %s155
      %p164 = scmp.eq.s32.totalorder %s17, 1
      %p165 = por %p163, %p164
      %p166 = scmp.ne.s32.totalorder %s155, %s156
      %p167 = scmp.eq.s32.totalorder %s17, 0
      %p168 = por %p166, %p167
      %p169 = scmp.ne.s32.totalorder %s155, %s156
      %p170 = scmp.eq.s32.totalorder %s18, 1
      %p171 = por %p169, %p170
      %p173 = scmp.ne.s32.totalorder %s156, %s172
      %p174 = scmp.eq.s32.totalorder %s18, 0
      %p175 = por %p173, %p174
      %p176 = scmp.le.s32.totalorder 1, %s12
      %p177 = scmp.lt.s32.totalorder %s12, 3
      %p178 = pnand %p176, %p177
      %p179 = pneg %p178
      // Predicated region
      $region9: #{criterion_forward.1} parent=5 // pred_check
        _
      $region10: #{criterion_forward.1} parent=5 // pred_check_branch
        %181 = sbr.rel (%p178) target = $region12
      $region11: #{criterion_forward.1} parent=5 // pred_region
        %s182 = ssub.s32 %s12, 1
      $region12: #{criterion_forward.1} parent=5 // pred_fallthru
        _
      %p183 = scmp.lt.s32.totalorder %s12, 2
      // Predicated region
      $region13: #{criterion_forward.1} parent=5 // pred_check
        %p184 = pneg %p183
      $region14: #{criterion_forward.1} parent=5 // pred_check_branch
        %186 = sbr.rel (%p184) target = $region16
      $region15: #{criterion_forward.1} parent=5 // pred_region
        // Predicated region
        $region17: #{criterion_forward.1} parent=15 // pred_check
          %p187 = pneg %p32
        $region18: #{criterion_forward.1} parent=15 // pred_check_branch
          %189 = sbr.rel (%p187) target = $region20
        $region19: #{criterion_forward.1} parent=15 // pred_region
          %p190 = scmp.lt.s32.totalorder %s12, 1
          %s191 = scalar_select %p190, %s12, 1
          %s192 = smul.addr %s191, 8
          %s193 = scalar_lea.vmem %s0, %s192
        $region20: #{criterion_forward.1} parent=15 // pred_fallthru
          _
        // Predicated region
        $region21: #{criterion_forward.1} parent=15 // pred_check
          %p194 = pneg %p58
        $region22: #{criterion_forward.1} parent=15 // pred_check_branch
          %196 = sbr.rel (%p194) target = $region24
        $region23: #{criterion_forward.1} parent=15 // pred_region
          %p197 = scmp.lt.s32.totalorder %s12, 1
          %s198 = scalar_select %p197, %s12, 1
          %s199 = smul.addr %s198, 8
          %s200 = scalar_lea.vmem %s1, %s199
        $region24: #{criterion_forward.1} parent=15 // pred_fallthru
          _
        // Predicated region
        $region25: #{criterion_forward.1} parent=15 // pred_check
          %p201 = pneg %p84
        $region26: #{criterion_forward.1} parent=15 // pred_check_branch
          %203 = sbr.rel (%p201) target = $region28
        $region27: #{criterion_forward.1} parent=15 // pred_region
          %s204 = sand.u32 %s74, 1
          %s205 = sand.u32 %s74, 1
          %s206 = smul.addr %s205, 32
          %s207 = scalar_lea.vmem [#allocation2], %s206
          %s208 = smul.addr %s12, 8
          %s209 = scalar_lea.vmem %s2, %s208
          // Predicated region
          $region29: #{criterion_forward.1} parent=27 // pred_check
            _
          $region30: #{criterion_forward.1} parent=27 // pred_check_branch
            %211 = sbr.rel (0) target = $region32
          $region31: #{criterion_forward.1} parent=27 // pred_region
            // Predicated region
            $region33: #{criterion_forward.1} parent=31 // pred_check
              _
            $region34: #{criterion_forward.1} parent=31 // pred_check_branch
              %213 = sbr.rel (0) target = $region36
            $region35: #{criterion_forward.1} parent=31 // pred_region
              // Predicated region
              $region48: #{criterion_forward.1} parent=35 // pred_check
                _
              $region49: #{criterion_forward.1} parent=35 // pred_check_branch
                %234 = sbr.rel (0) target = $region51
              $region50: #{criterion_forward.1} parent=35 // pred_region
                loop: start=0, step=1, limit=1
                $region52: #{criterion_forward.1} parent=50 // loop_pre_header
                  _
                $region53: #{criterion_forward.1} parent=50 // loop_header
                  %s236 = sphi 0, %s240
                  %p237 = scmp.ge.s32.totalorder %s236, 1
                  %s241 = sphi %s209, %s209
                  %s242 = sphi %s207, %s207
                $region54: #{criterion_forward.1} parent=50 // loop_header_branch
                  %239 = sbr.rel (%p237) target = $region58
                $region55: #{criterion_forward.1} parent=50 // loop_body
                  %v243 = vld [vmem:[%s241] sm:$0xff]
                  %244 = vst [vmem:[%s242] sm:$0xff] %v243
                  %v245 = vld [vmem:[%s241 + $0x10] sm:$0xff]
                  %246 = vst [vmem:[%s242 + $0x8] sm:$0xff] %v245
                  %v247 = vld [vmem:[%s241 + $0x20] sm:$0xff]
                  %248 = vst [vmem:[%s242 + $0x10] sm:$0xff] %v247
                  %v249 = vld [vmem:[%s241 + $0x30] sm:$0xff]
                  %250 = vst [vmem:[%s242 + $0x18] sm:$0xff] %v249
                $region56: #{criterion_forward.1} parent=50 // loop_footer
                  %s240 = sadd.s32 1, %s236
                $region57: #{criterion_forward.1} parent=50 // loop_footer_branch
                  %235 = sbr.rel target = $region53
                $region58: #{criterion_forward.1} parent=50 // loop_exit
                  _
              $region51: #{criterion_forward.1} parent=35 // pred_fallthru
                _
              // Predicated region
              $region59: #{criterion_forward.1} parent=35 // pred_check
                _
              $region60: #{criterion_forward.1} parent=35 // pred_check_branch
                %252 = sbr.rel target = $region62
              $region61: #{criterion_forward.1} parent=35 // pred_region
                _
              $region62: #{criterion_forward.1} parent=35 // pred_fallthru
                _
            $region36: #{criterion_forward.1} parent=31 // pred_fallthru
              _
            // Predicated region
            $region37: #{criterion_forward.1} parent=31 // pred_check
              _
            $region38: #{criterion_forward.1} parent=31 // pred_check_branch
              %215 = sbr.rel target = $region40
            $region39: #{criterion_forward.1} parent=31 // pred_region
              loop: start=0, step=1, limit=1
              $region41: #{criterion_forward.1} parent=39 // loop_pre_header
                _
              $region42: #{criterion_forward.1} parent=39 // loop_header
                %s218 = sphi 0, %s222
                %p219 = scmp.ge.s32.totalorder %s218, 1
                %s223 = sphi %s209, %s209
                %s224 = sphi %s207, %s207
              $region43: #{criterion_forward.1} parent=39 // loop_header_branch
                %221 = sbr.rel (%p219) target = $region47
              $region44: #{criterion_forward.1} parent=39 // loop_body
                %v225 = vld [vmem:[%s223] sm:$0xff]
                %226 = vst [vmem:[%s224] sm:$0xff] %v225
                %v227 = vld [vmem:[%s223 + $0x10] sm:$0xff]
                %228 = vst [vmem:[%s224 + $0x8] sm:$0xff] %v227
                %v229 = vld [vmem:[%s223 + $0x20] sm:$0xff]
                %230 = vst [vmem:[%s224 + $0x10] sm:$0xff] %v229
                %v231 = vld [vmem:[%s223 + $0x30] sm:$0xff]
                %232 = vst [vmem:[%s224 + $0x18] sm:$0xff] %v231
              $region45: #{criterion_forward.1} parent=39 // loop_footer
                %s222 = sadd.s32 1, %s218
              $region46: #{criterion_forward.1} parent=39 // loop_footer_branch
                %217 = sbr.rel target = $region42
              $region47: #{criterion_forward.1} parent=39 // loop_exit
                _
            $region40: #{criterion_forward.1} parent=31 // pred_fallthru
              _
          $region32: #{criterion_forward.1} parent=27 // pred_fallthru
            _
          %253 = vnop
        $region28: #{criterion_forward.1} parent=15 // pred_fallthru
          _
        // Predicated region
        $region63: #{criterion_forward.1} parent=15 // pred_check
          %p254 = pneg %p110
        $region64: #{criterion_forward.1} parent=15 // pred_check_branch
          %256 = sbr.rel (%p254) target = $region66
        $region65: #{criterion_forward.1} parent=15 // pred_region
          %s257 = sand.u32 %s100, 1
          %s258 = sand.u32 %s100, 1
          %s259 = smul.addr %s258, 32
          %s260 = scalar_lea.vmem [#allocation3], %s259
          %s261 = smul.addr %s12, 8
          %s262 = scalar_lea.vmem %s3, %s261
          // Predicated region
          $region67: #{criterion_forward.1} parent=65 // pred_check
            _
          $region68: #{criterion_forward.1} parent=65 // pred_check_branch
            %264 = sbr.rel (0) target = $region70
          $region69: #{criterion_forward.1} parent=65 // pred_region
            // Predicated region
            $region71: #{criterion_forward.1} parent=69 // pred_check
              _
            $region72: #{criterion_forward.1} parent=69 // pred_check_branch
              %266 = sbr.rel (0) target = $region74
            $region73: #{criterion_forward.1} parent=69 // pred_region
              // Predicated region
              $region86: #{criterion_forward.1} parent=73 // pred_check
                _
              $region87: #{criterion_forward.1} parent=73 // pred_check_branch
                %287 = sbr.rel (0) target = $region89
              $region88: #{criterion_forward.1} parent=73 // pred_region
                loop: start=0, step=1, limit=1
                $region90: #{criterion_forward.1} parent=88 // loop_pre_header
                  _
                $region91: #{criterion_forward.1} parent=88 // loop_header
                  %s289 = sphi 0, %s293
                  %p290 = scmp.ge.s32.totalorder %s289, 1
                  %s294 = sphi %s262, %s262
                  %s295 = sphi %s260, %s260
                $region92: #{criterion_forward.1} parent=88 // loop_header_branch
                  %292 = sbr.rel (%p290) target = $region96
                $region93: #{criterion_forward.1} parent=88 // loop_body
                  %v296 = vld [vmem:[%s294] sm:$0xff]
                  %297 = vst [vmem:[%s295] sm:$0xff] %v296
                  %v298 = vld [vmem:[%s294 + $0x10] sm:$0xff]
                  %299 = vst [vmem:[%s295 + $0x8] sm:$0xff] %v298
                  %v300 = vld [vmem:[%s294 + $0x20] sm:$0xff]
                  %301 = vst [vmem:[%s295 + $0x10] sm:$0xff] %v300
                  %v302 = vld [vmem:[%s294 + $0x30] sm:$0xff]
                  %303 = vst [vmem:[%s295 + $0x18] sm:$0xff] %v302
                $region94: #{criterion_forward.1} parent=88 // loop_footer
                  %s293 = sadd.s32 1, %s289
                $region95: #{criterion_forward.1} parent=88 // loop_footer_branch
                  %288 = sbr.rel target = $region91
                $region96: #{criterion_forward.1} parent=88 // loop_exit
                  _
              $region89: #{criterion_forward.1} parent=73 // pred_fallthru
                _
              // Predicated region
              $region97: #{criterion_forward.1} parent=73 // pred_check
                _
              $region98: #{criterion_forward.1} parent=73 // pred_check_branch
                %305 = sbr.rel target = $region100
              $region99: #{criterion_forward.1} parent=73 // pred_region
                _
              $region100: #{criterion_forward.1} parent=73 // pred_fallthru
                _
            $region74: #{criterion_forward.1} parent=69 // pred_fallthru
              _
            // Predicated region
            $region75: #{criterion_forward.1} parent=69 // pred_check
              _
            $region76: #{criterion_forward.1} parent=69 // pred_check_branch
              %268 = sbr.rel target = $region78
            $region77: #{criterion_forward.1} parent=69 // pred_region
              loop: start=0, step=1, limit=1
              $region79: #{criterion_forward.1} parent=77 // loop_pre_header
                _
              $region80: #{criterion_forward.1} parent=77 // loop_header
                %s271 = sphi 0, %s275
                %p272 = scmp.ge.s32.totalorder %s271, 1
                %s276 = sphi %s262, %s262
                %s277 = sphi %s260, %s260
              $region81: #{criterion_forward.1} parent=77 // loop_header_branch
                %274 = sbr.rel (%p272) target = $region85
              $region82: #{criterion_forward.1} parent=77 // loop_body
                %v278 = vld [vmem:[%s276] sm:$0xff]
                %279 = vst [vmem:[%s277] sm:$0xff] %v278
                %v280 = vld [vmem:[%s276 + $0x10] sm:$0xff]
                %281 = vst [vmem:[%s277 + $0x8] sm:$0xff] %v280
                %v282 = vld [vmem:[%s276 + $0x20] sm:$0xff]
                %283 = vst [vmem:[%s277 + $0x10] sm:$0xff] %v282
                %v284 = vld [vmem:[%s276 + $0x30] sm:$0xff]
                %285 = vst [vmem:[%s277 + $0x18] sm:$0xff] %v284
              $region83: #{criterion_forward.1} parent=77 // loop_footer
                %s275 = sadd.s32 1, %s271
              $region84: #{criterion_forward.1} parent=77 // loop_footer_branch
                %270 = sbr.rel target = $region80
              $region85: #{criterion_forward.1} parent=77 // loop_exit
                _
            $region78: #{criterion_forward.1} parent=69 // pred_fallthru
              _
          $region70: #{criterion_forward.1} parent=65 // pred_fallthru
            _
          %306 = vnop
        $region66: #{criterion_forward.1} parent=15 // pred_fallthru
          _
      $region16: #{criterion_forward.1} parent=5 // pred_fallthru
        _
      %p307 = scmp.le.s32.totalorder 1, %s12
      %p308 = scmp.lt.s32.totalorder %s12, 3
      %p309 = pnand %p307, %p308
      %p310 = pneg %p309
      // Predicated region
      $region101: #{criterion_forward.1} parent=5 // pred_check
        _
      $region102: #{criterion_forward.1} parent=5 // pred_check_branch
        %312 = sbr.rel (%p309) target = $region104
      $region103: #{criterion_forward.1} parent=5 // pred_region
        %s313 = ssub.s32 %s12, 1
        %s314 = sand.u32 %s77, 1
        %s315 = sand.u32 %s77, 1
        %s316 = smul.addr %s315, 32
        %s317 = scalar_lea.vmem [#allocation2], %s316
        // Predicated region
        $region105: #{criterion_forward.1} parent=103 // pred_check
          %p318 = pneg %p90
        $region106: #{criterion_forward.1} parent=103 // pred_check_branch
          %320 = sbr.rel (%p318) target = $region108
        $region107: #{criterion_forward.1} parent=103 // pred_region
          _
        $region108: #{criterion_forward.1} parent=103 // pred_fallthru
          _
        %s321 = sand.u32 %s103, 1
        %s322 = sand.u32 %s103, 1
        %s323 = smul.addr %s322, 32
        %s324 = scalar_lea.vmem [#allocation3], %s323
        // Predicated region
        $region109: #{criterion_forward.1} parent=103 // pred_check
          %p325 = pneg %p116
        $region110: #{criterion_forward.1} parent=103 // pred_check_branch
          %327 = sbr.rel (%p325) target = $region112
        $region111: #{criterion_forward.1} parent=103 // pred_region
          _
        $region112: #{criterion_forward.1} parent=103 // pred_fallthru
          _
        %p328 = scmp.lt.s32.totalorder %s17, 1
        %s329 = scalar_select %p328, %s17, 1
        %s330 = smul.addr %s329, 8
        %s331 = scalar_lea.vmem %s0, %s330
        %p332 = pneg %p38
        %p333 = pneg %p35
        %p334 = scmp.lt.s32.totalorder %s17, 1
        %s335 = scalar_select %p334, %s17, 1
        %s336 = smul.addr %s335, 8
        %s337 = scalar_lea.vmem %s1, %s336
        %p338 = pneg %p64
        %p339 = pneg %p61
        %s340 = sand.u32 %s77, 1
        %s341 = sand.u32 %s77, 1
        %s342 = smul.addr %s341, 32
        %s343 = scalar_lea.vmem [#allocation2], %s342
        %p344 = pneg %p90
        %p345 = pneg %p87
        %s346 = sand.u32 %s103, 1
        %s347 = sand.u32 %s103, 1
        %s348 = smul.addr %s347, 32
        %s349 = scalar_lea.vmem [#allocation3], %s348
        %p350 = pneg %p116
        %p351 = pneg %p113
        %p352 = pneg %p142
        %p353 = pneg %p139
        %p354 = scmp.lt.s32.totalorder %s17, 1
        %s355 = scalar_select %p354, %s17, 1
        %s356 = smul.addr %s355, 8
        %s357 = scalar_lea.vmem %s4, %s356
        %p358 = pneg %p168
        %p359 = pneg %p165
        %p360 = scmp.lt.s32.totalorder %s17, 1
        %s361 = scalar_select %p360, %s17, 1
        %s362 = smul.addr %s361, 8
        %s363 = scalar_lea.vmem %s5, %s362
        %p364 = scmp.lt.s32.totalorder %s17, 1
        %s365 = scalar_select %p364, %s17, 1
        %s366 = smul.addr %s365, 8
        %s367 = scalar_lea.vmem %s0, %s366
        %p368 = scmp.lt.s32.totalorder %s17, 1
        %s369 = scalar_select %p368, %s17, 1
        %s370 = smul.addr %s369, 8
        %s371 = scalar_lea.vmem %s1, %s370
        %p372 = scmp.lt.s32.totalorder %s17, 1
        %s373 = scalar_select %p372, %s17, 1
        %s374 = smul.addr %s373, 8
        %s375 = scalar_lea.vmem %s4, %s374
        %p376 = scmp.lt.s32.totalorder %s17, 1
        %s377 = scalar_select %p376, %s17, 1
        %s378 = smul.addr %s377, 8
        %s379 = scalar_lea.vmem %s5, %s378
        %v380 = vld [vmem:[%s367] sm:$0xff]
        %v381 = vld [vmem:[%s371] sm:$0xff]
        %vm382 = vcmp.gt.f32.partialorder %v380, 0.0
        %v383 = vsel %vm382, %v381, -1.0
        %384 = vst [vmem:[%s375] sm:$0xff] %v383
        %v385 = vlaneseq
        %v386 = vshrl.u32 %v385, 7
        %v387 = vlaneseq
        %v388 = vand.u32 %v387, 127
        %s389 = smul.u32 %s17, 1024
        %v390 = vmul.u32 %v386, 128
        %v391 = vstv %s389
        %v392 = vadd.s32 %v391, %v390
        %v393 = vadd.s32 %v392, %v388
        %vm394 = vcmp.lt.s32.totalorder %v393, 2000
        %v395 = vsel %vm394, 1, 0
        %v396 = vcvt.s32.f32 %v395
        %v397 = vmax.f32 %v380, 0.0
        %v398 = vmul.f32 %v380, %v381
        %v399 = vsub.f32 %v397, %v398
        %v400 = vand.u32 2147483647, %v380
        %v401 = vsub.f32 0.0, %v400
        %v402 = vmul.f32 %v401, 1.442695
        %v403 = vpow.pop %v402
        %v404 = vadd.f32 %v403, 1.0
        %v405 = vlog2.pop %v404
        %v406 = vmul.f32 %v405, 0.6931472
        %v407 = vmul.f32 -0.5, %v403
        %v408 = vadd.f32 %v407, 1.0
        %v409 = vmul.f32 %v408, %v403
        %v410 = vand.u32 2147483647, %v403
        %vm411 = vcmp.lt.f32.partialorder %v410, 0.0004427343
        %v412 = vsel %vm411, %v409, %v406
        %v413 = vadd.f32 %v399, %v412
        %v414 = vmul.f32 %v413, %v396
        %415 = vadd.xlane.f32.xlu0 %v414
        %v416 = vpop.xlane.xlu0 %415
        %v417 = vrot.slane %v416, 4
        %v418 = vadd.f32 %v416, %v417
        %v419 = vrot.slane %v418, 2
        %v420 = vadd.f32 %v418, %v419
        %v421 = vrot.slane %v420, 1
        %v422 = vadd.f32 %v420, %v421
        %s423 = vtos %v422
        %vm424 = vcmp.gt.f32.partialorder %v381, 0.0
        %v425 = vsel %vm424, 1, 0
        %v426 = vcvt.s32.f32 %v425
        %v427 = vmul.f32 %v426, %v396
        %428 = vadd.xlane.f32.xlu0 %v427
        %v429 = vpop.xlane.xlu0 %428
        %v430 = vrot.slane %v429, 4
        %v431 = vadd.f32 %v429, %v430
        %v432 = vrot.slane %v431, 2
        %v433 = vadd.f32 %v431, %v432
        %v434 = vrot.slane %v433, 1
        %v435 = vadd.f32 %v433, %v434
        %s436 = vtos %v435
        %v437 = vld [vmem:[%s317] sm:$0xff]
        %v438 = vld [vmem:[%s317 + $0x8] sm:$0xff]
        %v439 = vld [vmem:[%s317 + $0x10] sm:$0xff]
        %v440 = vld [vmem:[%s317 + $0x18] sm:$0xff]
        %v441 = vld [vmem:[%s324] sm:$0xff]
        %v442 = vld [vmem:[%s324 + $0x8] sm:$0xff]
        %v443 = vld [vmem:[%s324 + $0x10] sm:$0xff]
        %v444 = vld [vmem:[%s324 + $0x18] sm:$0xff]
        %v445 = vsub.f32 %v437, %v441
        %v446 = vsub.f32 %v438, %v442
        %v447 = vsub.f32 %v439, %v443
        %v448 = vsub.f32 %v440, %v444
        %v449 = vand.u32 2147483647, %v445
        %v450 = vand.u32 2147483647, %v446
        %v451 = vand.u32 2147483647, %v447
        %v452 = vand.u32 2147483647, %v448
        %vm453 = vcmp.lt.f32.partialorder %v449, 1.0
        %vm454 = vcmp.lt.f32.partialorder %v450, 1.0
        %vm455 = vcmp.lt.f32.partialorder %v451, 1.0
        %vm456 = vcmp.lt.f32.partialorder %v452, 1.0
        %v457 = vmul.f32 %v445, 0.5
        %v458 = vmul.f32 %v446, 0.5
        %v459 = vmul.f32 %v447, 0.5
        %v460 = vmul.f32 %v448, 0.5
        %v461 = vmul.f32 %v457, %v445
        %v462 = vmul.f32 %v458, %v446
        %v463 = vmul.f32 %v459, %v447
        %v464 = vmul.f32 %v460, %v448
        %v465 = vsub.f32 %v449, 0.5
        %v466 = vsub.f32 %v450, 0.5
        %v467 = vsub.f32 %v451, 0.5
        %v468 = vsub.f32 %v452, 0.5
        %v469 = vsel %vm453, %v461, %v465
        %v470 = vsel %vm454, %v462, %v466
        %v471 = vsel %vm455, %v463, %v467
        %v472 = vsel %vm456, %v464, %v468
        %v473 = vmul.f32 %v469, %v427
        %v474 = vmul.f32 %v470, %v427
        %v475 = vmul.f32 %v471, %v427
        %v476 = vmul.f32 %v472, %v427
        %v477 = vadd.f32 %v473, %v474
        %v478 = vadd.f32 %v477, %v475
        %v479 = vadd.f32 %v478, %v476
        %480 = vadd.xlane.f32.xlu0 %v479
        %v481 = vpop.xlane.xlu0 %480
        %v482 = vrot.slane %v481, 4
        %v483 = vadd.f32 %v481, %v482
        %v484 = vrot.slane %v483, 2
        %v485 = vadd.f32 %v483, %v484
        %v486 = vrot.slane %v485, 1
        %v487 = vadd.f32 %v485, %v486
        %s488 = vtos %v487
        %vm489 = vcmp.eq.s32.totalorder %v388, 0
        %vm490 = vcmp.eq.s32.totalorder %v388, 1
        %vm491 = vcmp.eq.s32.totalorder %v388, 2
        %v492 = vstv %s436
        %v493 = vsel %vm491, %v492, 0.0
        %v494 = vstv %s488
        %v495 = vsel %vm490, %v494, %v493
        %v496 = vstv %s423
        %v497 = vsel %vm489, %v496, %v495
        %498 = vst [vmem:[%s379] sm:$0xff] %v497
        %p499 = scmp.lt.s32.totalorder %s17, 1
        %s500 = scalar_select %p499, %s17, 1
        %s501 = smul.addr %s500, 8
        %s502 = scalar_lea.vmem %s4, %s501
        %p503 = scmp.lt.s32.totalorder %s17, 1
        %s504 = scalar_select %p503, %s17, 1
        %s505 = smul.addr %s504, 8
        %s506 = scalar_lea.vmem %s5, %s505
        // Predicated region
        $region113: #{criterion_forward.1} parent=103 // pred_check
          %p507 = pneg %p139
        $region114: #{criterion_forward.1} parent=103 // pred_check_branch
          %509 = sbr.rel (%p507) target = $region116
        $region115: #{criterion_forward.1} parent=103 // pred_region
          _
        $region116: #{criterion_forward.1} parent=103 // pred_fallthru
          _
        // Predicated region
        $region117: #{criterion_forward.1} parent=103 // pred_check
          %p510 = pneg %p165
        $region118: #{criterion_forward.1} parent=103 // pred_check_branch
          %512 = sbr.rel (%p510) target = $region120
        $region119: #{criterion_forward.1} parent=103 // pred_region
          _
        $region120: #{criterion_forward.1} parent=103 // pred_fallthru
          _
      $region104: #{criterion_forward.1} parent=5 // pred_fallthru
        _
      %p513 = scmp.le.s32.totalorder 2, %s12
      // Predicated region
      $region121: #{criterion_forward.1} parent=5 // pred_check
        %p514 = pneg %p513
      $region122: #{criterion_forward.1} parent=5 // pred_check_branch
        %516 = sbr.rel (%p514) target = $region124
      $region123: #{criterion_forward.1} parent=5 // pred_region
        %s517 = ssub.s32 %s12, 2
        // Predicated region
        $region125: #{criterion_forward.1} parent=123 // pred_check
          %p518 = pneg %p145
        $region126: #{criterion_forward.1} parent=123 // pred_check_branch
          %520 = sbr.rel (%p518) target = $region128
        $region127: #{criterion_forward.1} parent=123 // pred_region
          %p521 = scmp.lt.s32.totalorder %s18, 1
          %s522 = scalar_select %p521, %s18, 1
          %s523 = smul.addr %s522, 8
          %s524 = scalar_lea.vmem %s4, %s523
        $region128: #{criterion_forward.1} parent=123 // pred_fallthru
          _
        // Predicated region
        $region129: #{criterion_forward.1} parent=123 // pred_check
          %p525 = pneg %p171
        $region130: #{criterion_forward.1} parent=123 // pred_check_branch
          %527 = sbr.rel (%p525) target = $region132
        $region131: #{criterion_forward.1} parent=123 // pred_region
          %p528 = scmp.lt.s32.totalorder %s18, 1
          %s529 = scalar_select %p528, %s18, 1
          %s530 = smul.addr %s529, 8
          %s531 = scalar_lea.vmem %s5, %s530
        $region132: #{criterion_forward.1} parent=123 // pred_fallthru
          _
      $region124: #{criterion_forward.1} parent=5 // pred_fallthru
        _
    $region6: #{criterion_forward.1} parent=1 // loop_footer
      %s16 = sadd.s32 1, %s12
    $region7: #{criterion_forward.1} parent=1 // loop_footer_branch
      %11 = sbr.rel target = $region3
    $region8: #{criterion_forward.1} parent=1 // loop_exit
      _

</llo_original>
